<compile_context>
chip_gen: v7x
topology: tpu7x:2x2x1
jax: 0.10.0
libtpu: 0.0.40
codegen_flags: <defaults>
</compile_context>

<pallas_src>
import functools

import jax
import jax.numpy as jnp
from jax.experimental import pallas as pl
from jax.experimental.pallas import tpu as pltpu

_LANE = 128
_SUBLANE = 8


def _round_up(x, m):
    return (x + m - 1) // m * m


# ----------------------------------------------------------------------------
# Pallas kernel: fused  x -> relu(xW0+b0) -> ... -> (relu?)(xWf+bf)
# ----------------------------------------------------------------------------
def _mlp_kernel(x_ref, *refs, num_hidden: int, relu_final: bool):
    # refs layout: w0, b0, w1, b1, ..., wf, bf, o_ref
    o_ref = refs[-1]
    wb = refs[:-1]

    h = x_ref[...]
    for i in range(num_hidden):
        w = wb[2 * i][...]
        b = wb[2 * i + 1][...]
        h = jnp.dot(h, w, preferred_element_type=jnp.float32) + b
        h = jnp.maximum(h, 0.0)

    wf = wb[2 * num_hidden][...]
    bf = wb[2 * num_hidden + 1][...]
    y = jnp.dot(h, wf, preferred_element_type=jnp.float32) + bf
    if relu_final:
        y = jnp.maximum(y, 0.0)
    o_ref[...] = y.astype(o_ref.dtype)


# ----------------------------------------------------------------------------
# One-time parameter prep: biases -> (1, dout), lane-pad final layer to 128.
# ----------------------------------------------------------------------------
def prepare_params(params):
    flat = []
    for (w, b) in params["hiddens"]:
        flat.append(w)
        flat.append(b.reshape(1, -1))
    wf, bf = params["final"]
    dout = wf.shape[1]
    dout_pad = _round_up(dout, _LANE)
    if dout_pad != dout:
        wf = jnp.pad(wf, ((0, 0), (0, dout_pad - dout)))
        bf = jnp.pad(bf, (0, dout_pad - dout))
    flat.append(wf)
    flat.append(bf.reshape(1, -1))
    return {
        "flat": tuple(flat),
        "num_hidden": len(params["hiddens"]),
        "output_dim": dout,
    }


# ----------------------------------------------------------------------------
# Forward: single fused pallas_call, grid over the batch dimension.
# ----------------------------------------------------------------------------
def mlp_net_forward(x, prepared, process_final: bool):
    flat = prepared["flat"]
    num_hidden = prepared["num_hidden"]
    output_dim = prepared["output_dim"]

    batch, din = x.shape
    dout_pad = flat[-1].shape[1]
    dtype = x.dtype

    # Batch tile: multiple of 8 sublanes, capped so VMEM stays comfortable
    # even on v7x's 64 MiB (512 rows x 128 f32 lanes ~ 256 KiB per buffer).
    tile_b = min(512, _round_up(batch, _SUBLANE))
    b_pad = _round_up(batch, tile_b)
    if b_pad != batch:
        x = jnp.pad(x, ((0, b_pad - batch), (0, 0)))

    kernel = functools.partial(
        _mlp_kernel, num_hidden=num_hidden, relu_final=process_final
    )

    # Advisory cost estimate for XLA scheduling.
    itemsize = jnp.dtype(dtype).itemsize
    flops = 0
    bytes_accessed = b_pad * din * itemsize + b_pad * dout_pad * itemsize
    for i in range(num_hidden + 1):
        w = flat[2 * i]
        b = flat[2 * i + 1]
        flops += 2 * b_pad * w.shape[0] * w.shape[1]
        bytes_accessed += (w.size + b.size) * jnp.dtype(w.dtype).itemsize

    # Weights / biases: full-array blocks, resident in VMEM across grid steps.
    wb_specs = [pl.BlockSpec(arr.shape, lambda i: (0, 0)) for arr in flat]

    grid = (b_pad // tile_b,)
    out = pl.pallas_call(
        kernel,
        out_shape=jax.ShapeDtypeStruct((b_pad, dout_pad), dtype),
        grid=grid,
        in_specs=[pl.BlockSpec((tile_b, din), lambda i: (i, 0))] + wb_specs,
        out_specs=pl.BlockSpec((tile_b, dout_pad), lambda i: (i, 0)),
        compiler_params=pltpu.CompilerParams(
            dimension_semantics=("parallel",),
        ),
        cost_estimate=pl.CostEstimate(
            flops=flops, transcendentals=0, bytes_accessed=bytes_accessed
        ),
    )(x, *flat)

    return out[:batch, :output_dim]


# ----------------------------------------------------------------------------
# Deterministic parameter init (mimics nn.Linear default: U(-1/sqrt(in), +))
# ----------------------------------------------------------------------------
def init_params(key, input_dim, hidden_layers, output_dim, dtype=jnp.float32):
    dims = [input_dim] + list(hidden_layers)
    params = {"hiddens": []}
    for i in range(len(hidden_layers)):
        key, kw, kb = jax.random.split(key, 3)
        bound = 1.0 / jnp.sqrt(dims[i])
        w = jax.random.uniform(kw, (dims[i], dims[i + 1]), dtype, -bound, bound)
        b = jax.random.uniform(kb, (dims[i + 1],), dtype, -bound, bound)
        params["hiddens"].append((w, b))
    key, kw, kb = jax.random.split(key, 3)
    bound = 1.0 / jnp.sqrt(dims[-1])
    wf = jax.random.uniform(kw, (dims[-1], output_dim), dtype, -bound, bound)
    bf = jax.random.uniform(kb, (output_dim,), dtype, -bound, bound)
    params["final"] = (wf, bf)
    return params


if __name__ == "__main__":
    # configs: input_dim=32, hidden_layers=[32, 32], output_dim=8,
    #          drop_rate=0.1 (eval -> identity), process_final=True
    configs = {
        "input_dim": 32,
        "hidden_layers": [32, 32],
        "output_dim": 8,
        "drop_rate": 0.1,
        "process_final": True,
    }

    key = jax.random.PRNGKey(0)
    key, kx = jax.random.split(key)
    batch = 8
    x = jax.random.normal(kx, (batch, configs["input_dim"]), jnp.float32)

    params = init_params(
        key, configs["input_dim"], configs["hidden_layers"], configs["output_dim"]
    )
    prepared = prepare_params(params)

    out = mlp_net_forward(x, prepared, configs["process_final"])
    out = jax.block_until_ready(out)

    # Pure-JAX reference.
    ref = x
    for (w, b) in params["hiddens"]:
        ref = jnp.maximum(ref @ w + b, 0.0)
    wf, bf = params["final"]
    ref = (
        jnp.maximum(ref @ wf + bf, 0.0)
        if configs["process_final"]
        else ref @ wf + bf
    )

    assert out.shape == (batch, configs["output_dim"])
    assert jnp.allclose(out, ref, atol=1e-5, rtol=1e-5)

    print("KERNEL_OK")
</pallas_src>

<mosaic_0001>
module attributes {stable_mosaic.version = 11 : i64} {
  func.func @_mlp_kernel(%arg0: i32, %arg1: memref<8x32xf32, #tpu.memory_space<vmem>>, %arg2: memref<32x32xf32, #tpu.memory_space<vmem>>, %arg3: memref<1x32xf32, #tpu.memory_space<vmem>>, %arg4: memref<32x32xf32, #tpu.memory_space<vmem>>, %arg5: memref<1x32xf32, #tpu.memory_space<vmem>>, %arg6: memref<32x128xf32, #tpu.memory_space<vmem>>, %arg7: memref<1x128xf32, #tpu.memory_space<vmem>>, %arg8: memref<8x128xf32, #tpu.memory_space<vmem>>) attributes {dimension_semantics = [#tpu.dimension_semantics<parallel>], iteration_bounds = array<i64: 1>, scalar_prefetch = 0 : i64, scratch_operands = 0 : i64, tpu.core_type = #tpu.core_type<tc>, window_params = [{transform_indices = @transform_0, window_bounds = array<i64: 8, 32>}, {pipeline_mode = #tpu.pipeline_mode<synchronous>, transform_indices = @transform_1, window_bounds = array<i64: 32, 32>}, {pipeline_mode = #tpu.pipeline_mode<synchronous>, transform_indices = @transform_2, window_bounds = array<i64: 1, 32>}, {pipeline_mode = #tpu.pipeline_mode<synchronous>, transform_indices = @transform_3, window_bounds = array<i64: 32, 32>}, {pipeline_mode = #tpu.pipeline_mode<synchronous>, transform_indices = @transform_4, window_bounds = array<i64: 1, 32>}, {pipeline_mode = #tpu.pipeline_mode<synchronous>, transform_indices = @transform_5, window_bounds = array<i64: 32, 128>}, {pipeline_mode = #tpu.pipeline_mode<synchronous>, transform_indices = @transform_6, window_bounds = array<i64: 1, 128>}, {transform_indices = @transform_7, window_bounds = array<i64: 8, 128>}]} {
    %c0 = arith.constant 0 : index
    %c0_0 = arith.constant 0 : index
    %0 = vector.load %arg1[%c0, %c0_0] : memref<8x32xf32, #tpu.memory_space<vmem>>, vector<8x32xf32>
    %c0_1 = arith.constant 0 : index
    %c0_2 = arith.constant 0 : index
    %1 = vector.load %arg2[%c0_1, %c0_2] : memref<32x32xf32, #tpu.memory_space<vmem>>, vector<32x32xf32>
    %c0_3 = arith.constant 0 : index
    %c0_4 = arith.constant 0 : index
    %2 = vector.load %arg3[%c0_3, %c0_4] : memref<1x32xf32, #tpu.memory_space<vmem>>, vector<1x32xf32>
    %cst = arith.constant dense<0.000000e+00> : vector<8x32xf32>
    %3 = tpu.matmul %0, %1, %cst {dimension_numbers = #tpu.dot_dimension_numbers<[1], [0], [0], [1], [0, 0, 1, 1], [], []>} : vector<8x32xf32>, vector<32x32xf32>, vector<8x32xf32> -> vector<8x32xf32>
    %4 = vector.broadcast %2 : vector<1x32xf32> to vector<8x32xf32>
    %5 = arith.addf %3, %4 : vector<8x32xf32>
    %cst_5 = arith.constant 0.000000e+00 : f32
    %6 = vector.broadcast %cst_5 : f32 to vector<8x32xf32>
    %7 = arith.maximumf %5, %6 : vector<8x32xf32>
    %c0_6 = arith.constant 0 : index
    %c0_7 = arith.constant 0 : index
    %8 = vector.load %arg4[%c0_6, %c0_7] : memref<32x32xf32, #tpu.memory_space<vmem>>, vector<32x32xf32>
    %c0_8 = arith.constant 0 : index
    %c0_9 = arith.constant 0 : index
    %9 = vector.load %arg5[%c0_8, %c0_9] : memref<1x32xf32, #tpu.memory_space<vmem>>, vector<1x32xf32>
    %cst_10 = arith.constant dense<0.000000e+00> : vector<8x32xf32>
    %10 = tpu.matmul %7, %8, %cst_10 {dimension_numbers = #tpu.dot_dimension_numbers<[1], [0], [0], [1], [0, 0, 1, 1], [], []>} : vector<8x32xf32>, vector<32x32xf32>, vector<8x32xf32> -> vector<8x32xf32>
    %11 = vector.broadcast %9 : vector<1x32xf32> to vector<8x32xf32>
    %12 = arith.addf %10, %11 : vector<8x32xf32>
    %cst_11 = arith.constant 0.000000e+00 : f32
    %13 = vector.broadcast %cst_11 : f32 to vector<8x32xf32>
    %14 = arith.maximumf %12, %13 : vector<8x32xf32>
    %c0_12 = arith.constant 0 : index
    %c0_13 = arith.constant 0 : index
    %15 = vector.load %arg6[%c0_12, %c0_13] : memref<32x128xf32, #tpu.memory_space<vmem>>, vector<32x128xf32>
    %c0_14 = arith.constant 0 : index
    %c0_15 = arith.constant 0 : index
    %16 = vector.load %arg7[%c0_14, %c0_15] : memref<1x128xf32, #tpu.memory_space<vmem>>, vector<1x128xf32>
    %cst_16 = arith.constant dense<0.000000e+00> : vector<8x128xf32>
    %17 = tpu.matmul %14, %15, %cst_16 {dimension_numbers = #tpu.dot_dimension_numbers<[1], [0], [0], [1], [0, 0, 1, 1], [], []>} : vector<8x32xf32>, vector<32x128xf32>, vector<8x128xf32> -> vector<8x128xf32>
    %18 = vector.broadcast %16 : vector<1x128xf32> to vector<8x128xf32>
    %19 = arith.addf %17, %18 : vector<8x128xf32>
    %cst_17 = arith.constant 0.000000e+00 : f32
    %20 = vector.broadcast %cst_17 : f32 to vector<8x128xf32>
    %21 = arith.maximumf %19, %20 : vector<8x128xf32>
    %c0_18 = arith.constant 0 : index
    %c0_19 = arith.constant 0 : index
    %22 = vector.load %arg8[%c0_18, %c0_19] : memref<8x128xf32, #tpu.memory_space<vmem>>, vector<8x128xf32>
    tpu.vector_store %arg8[%c0_18, %c0_19], %21 {strides = array<i32>} : memref<8x128xf32, #tpu.memory_space<vmem>>, vector<8x128xf32>,
    return
  }
  func.func @transform_0(%arg0: i32) -> (i32, i32) {
    %c0_i32 = arith.constant 0 : i32
    %c0_i32_0 = arith.constant 0 : i32
    return %arg0, %c0_i32 : i32, i32
  }
  func.func @transform_1(%arg0: i32) -> (i32, i32) {
    %c0_i32 = arith.constant 0 : i32
    %c0_i32_0 = arith.constant 0 : i32
    %c0_i32_1 = arith.constant 0 : i32
    return %c0_i32, %c0_i32_0 : i32, i32
  }
  func.func @transform_2(%arg0: i32) -> (i32, i32) {
    %c0_i32 = arith.constant 0 : i32
    %c0_i32_0 = arith.constant 0 : i32
    %c0_i32_1 = arith.constant 0 : i32
    return %c0_i32, %c0_i32_0 : i32, i32
  }
  func.func @transform_3(%arg0: i32) -> (i32, i32) {
    %c0_i32 = arith.constant 0 : i32
    %c0_i32_0 = arith.constant 0 : i32
    %c0_i32_1 = arith.constant 0 : i32
    return %c0_i32, %c0_i32_0 : i32, i32
  }
  func.func @transform_4(%arg0: i32) -> (i32, i32) {
    %c0_i32 = arith.constant 0 : i32
    %c0_i32_0 = arith.constant 0 : i32
    %c0_i32_1 = arith.constant 0 : i32
    return %c0_i32, %c0_i32_0 : i32, i32
  }
  func.func @transform_5(%arg0: i32) -> (i32, i32) {
    %c0_i32 = arith.constant 0 : i32
    %c0_i32_0 = arith.constant 0 : i32
    %c0_i32_1 = arith.constant 0 : i32
    return %c0_i32, %c0_i32_0 : i32, i32
  }
  func.func @transform_6(%arg0: i32) -> (i32, i32) {
    %c0_i32 = arith.constant 0 : i32
    %c0_i32_0 = arith.constant 0 : i32
    %c0_i32_1 = arith.constant 0 : i32
    return %c0_i32, %c0_i32_0 : i32, i32
  }
  func.func @transform_7(%arg0: i32) -> (i32, i32) {
    %c0_i32 = arith.constant 0 : i32
    %c0_i32_0 = arith.constant 0 : i32
    return %arg0, %c0_i32 : i32, i32
  }
}

</mosaic_0001>

<llo_original>
// kernel: tpu_custom_call.1
$region0: #{tpu_custom_call.1}
  #allocation0 [shape = 'u32[]', space=smem, size = 0x4, offset = 0x4, fixed_abs, tag = 'smem constant byte address 0x4 - core index']
  #allocation1 [shape = 'u32[144,128]{1,0:T(1,128)}', space=vmem, size = 0x12000, scoped, tag = 'internal scratch']
  %s0 = inlined_call_operand.hbm [shape: f32[8,32], index: 0, kind: input, shape index: {}]
  %s1 = inlined_call_operand.hbm [shape: f32[32,32], index: 1, kind: input, shape index: {}]
  %s2 = inlined_call_operand.vmem [shape: f32[1,32], index: 2, kind: input, shape index: {}]
  %s3 = inlined_call_operand.hbm [shape: f32[32,32], index: 3, kind: input, shape index: {}]
  %s4 = inlined_call_operand.vmem [shape: f32[1,32], index: 4, kind: input, shape index: {}]
  %s5 = inlined_call_operand.hbm [shape: f32[32,128], index: 5, kind: input, shape index: {}]
  %s6 = inlined_call_operand.vmem [shape: f32[1,128], index: 6, kind: input, shape index: {}]
  %s7 = inlined_call_operand.hbm [shape: f32[8,128], index: 7, kind: output, shape index: {}]
  %s8 = sld [smem:[#allocation0]]
  $region54: #{tpu_custom_call.1} parent=0
    _
  %s10 = ssub.s32 1, %s8
  %s11 = scalar_select 0, %s10, %s8
  $region1: #{tpu_custom_call.1} parent=0
    #allocation2 [shape = 'u8[4096]{0}', space=vmem, size = 0x1000, scoped, tag = 'input window, operand 0, single buffered']
    #allocation3 [shape = 's32[1]{0}', space=sflag, size = 0x4, scoped, tag = 'scoped memory for tpu_custom_call.1']
    #allocation4 [shape = 's32[1]{0}', space=sflag, size = 0x4, scoped, tag = 'scoped memory for tpu_custom_call.1']
    #allocation5 [shape = 'u8[16384]{0}', space=vmem, size = 0x4000, scoped, tag = 'input window, operand 1, single buffered']
    #allocation6 [shape = 's32[1]{0}', space=sflag, size = 0x4, scoped, tag = 'scoped memory for tpu_custom_call.1']
    #allocation7 [shape = 'u8[16384]{0}', space=vmem, size = 0x4000, scoped, tag = 'input window, operand 3, single buffered']
    #allocation8 [shape = 'u8[16384]{0}', space=vmem, size = 0x4000, scoped, tag = 'input window, operand 5, single buffered']
    #allocation9 [shape = 's32[1]{0}', space=sflag, size = 0x4, scoped, tag = 'scoped memory for tpu_custom_call.1']
    #allocation10 [shape = 'u8[4096]{0}', space=vmem, size = 0x1000, scoped, tag = 'output window, operand 0, single buffered']
    %12 = vsyncpa [#allocation3], 0
    %13 = vsyncpa [#allocation6], 0
    %14 = vsyncpa [#allocation9], 0
    %15 = vsyncpa [#allocation4], 0
    // Predicated region
    $region2: #{tpu_custom_call.1} parent=1 // pred_check
      _
    $region3: #{tpu_custom_call.1} parent=1 // pred_check_branch
      %17 = sbr.rel (0) target = $region5
    $region4: #{tpu_custom_call.1} parent=1 // pred_region
      %s19 = ssub.s32 128, 128
      %20 = vsyncadd [#allocation3], %s19
      %s22 = sshll.u32 [#allocation2], 4
      %s23 = int_to_ptr.vmem [resolvable:$true] %s22
      %25 = dma.hbm_to_vmem [thread:$0]  %s0, 128, %s23, [#allocation3]
    $region5: #{tpu_custom_call.1} parent=1 // pred_fallthru
      _
    // Predicated region
    $region6: #{tpu_custom_call.1} parent=1 // pred_check
      _
    $region7: #{tpu_custom_call.1} parent=1 // pred_check_branch
      %27 = sbr.rel (0) target = $region9
    $region8: #{tpu_custom_call.1} parent=1 // pred_region
      %s29 = ssub.s32 512, 512
      %30 = vsyncadd [#allocation6], %s29
      %s31 = sshll.u32 [#allocation5], 4
      %s32 = int_to_ptr.vmem [resolvable:$true] %s31
      %37 = dma.hbm_to_vmem [thread:$0]  %s1, 512, %s32, [#allocation6], 128, 128, 8
    $region9: #{tpu_custom_call.1} parent=1 // pred_fallthru
      _
    // Predicated region
    $region10: #{tpu_custom_call.1} parent=1 // pred_check
      _
    $region11: #{tpu_custom_call.1} parent=1 // pred_check_branch
      %39 = sbr.rel (0) target = $region13
    $region12: #{tpu_custom_call.1} parent=1 // pred_region
      _
    $region13: #{tpu_custom_call.1} parent=1 // pred_fallthru
      _
    // Predicated region
    $region14: #{tpu_custom_call.1} parent=1 // pred_check
      _
    $region15: #{tpu_custom_call.1} parent=1 // pred_check_branch
      %41 = sbr.rel (0) target = $region17
    $region16: #{tpu_custom_call.1} parent=1 // pred_region
      %s43 = ssub.s32 512, 512
      %44 = vsyncadd [#allocation6], %s43
      %s45 = sshll.u32 [#allocation7], 4
      %s46 = int_to_ptr.vmem [resolvable:$true] %s45
      %51 = dma.hbm_to_vmem [thread:$0]  %s3, 512, %s46, [#allocation6], 128, 128, 8
    $region17: #{tpu_custom_call.1} parent=1 // pred_fallthru
      _
    // Predicated region
    $region18: #{tpu_custom_call.1} parent=1 // pred_check
      _
    $region19: #{tpu_custom_call.1} parent=1 // pred_check_branch
      %53 = sbr.rel (0) target = $region21
    $region20: #{tpu_custom_call.1} parent=1 // pred_region
      _
    $region21: #{tpu_custom_call.1} parent=1 // pred_fallthru
      _
    // Predicated region
    $region22: #{tpu_custom_call.1} parent=1 // pred_check
      _
    $region23: #{tpu_custom_call.1} parent=1 // pred_check_branch
      %55 = sbr.rel (0) target = $region25
    $region24: #{tpu_custom_call.1} parent=1 // pred_region
      %s57 = ssub.s32 512, 512
      %58 = vsyncadd [#allocation9], %s57
      %s59 = sshll.u32 [#allocation8], 4
      %s60 = int_to_ptr.vmem [resolvable:$true] %s59
      %65 = dma.hbm_to_vmem [thread:$0]  %s5, 512, %s60, [#allocation9], 128, 128, 8
    $region25: #{tpu_custom_call.1} parent=1 // pred_fallthru
      _
    // Predicated region
    $region26: #{tpu_custom_call.1} parent=1 // pred_check
      _
    $region27: #{tpu_custom_call.1} parent=1 // pred_check_branch
      %67 = sbr.rel (0) target = $region29
    $region28: #{tpu_custom_call.1} parent=1 // pred_region
      _
    $region29: #{tpu_custom_call.1} parent=1 // pred_fallthru
      _
    // Predicated region
    $region30: #{tpu_custom_call.1} parent=1 // pred_check
      _
    $region31: #{tpu_custom_call.1} parent=1 // pred_check_branch
      %69 = sbr.rel (0) target = $region33
    $region32: #{tpu_custom_call.1} parent=1 // pred_region
      %70 = dma.done [#allocation3], 128
    $region33: #{tpu_custom_call.1} parent=1 // pred_fallthru
      _
    // Predicated region
    $region34: #{tpu_custom_call.1} parent=1 // pred_check
      _
    $region35: #{tpu_custom_call.1} parent=1 // pred_check_branch
      %72 = sbr.rel (0) target = $region37
    $region36: #{tpu_custom_call.1} parent=1 // pred_region
      %73 = dma.done [#allocation6], 512
    $region37: #{tpu_custom_call.1} parent=1 // pred_fallthru
      _
    // Predicated region
    $region38: #{tpu_custom_call.1} parent=1 // pred_check
      _
    $region39: #{tpu_custom_call.1} parent=1 // pred_check_branch
      %75 = sbr.rel (0) target = $region41
    $region40: #{tpu_custom_call.1} parent=1 // pred_region
      %76 = dma.done [#allocation6], 512
    $region41: #{tpu_custom_call.1} parent=1 // pred_fallthru
      _
    // Predicated region
    $region42: #{tpu_custom_call.1} parent=1 // pred_check
      _
    $region43: #{tpu_custom_call.1} parent=1 // pred_check_branch
      %78 = sbr.rel (0) target = $region45
    $region44: #{tpu_custom_call.1} parent=1 // pred_region
      %79 = dma.done [#allocation9], 512
    $region45: #{tpu_custom_call.1} parent=1 // pred_fallthru
      _
    %v80 = vld [vmem:[#allocation2] sm:$0xff]
    %v81 = vld [vmem:[#allocation5] sm:$0xff]
    %v82 = vld [vmem:[#allocation5 + $0x8] sm:$0xff]
    %v83 = vld [vmem:[#allocation5 + $0x10] sm:$0xff]
    %v84 = vld [vmem:[#allocation5 + $0x18] sm:$0xff]
    %v85 = vld [vmem:[%s2] sm:$0x1]
    %v87 = vlaneseq
    %v88 = vshrl.u32 %v87, 7
    %v89 = vsub.s32 0, %v88
    %v90 = vrot.slane %v85, %v89
    %vm92 = vcmask 261120
    %v94 = vsel %vm92, %v80, 0
    %96 = vmatprep.subr.mxu0 0.0
    %97 = vmatpush1.msra.mxu0 %v81
    %98 = vmatprep.subr.mxu0 0.0
    %99 = vmatpush1.msra.mxu0 %v82
    %100 = vmatprep.subr.mxu0 0.0
    %101 = vmatpush1.msra.mxu0 %v83
    %102 = vmatprep.subr.mxu0 0.0
    %103 = vmatpush1.msra.mxu0 %v84
    %104 = vmatprep.subr.mxu0 0.0
    %105 = vmatpush1.msra.mxu0 0.0
    %106 = vmatprep.subr.mxu0 0.0
    %107 = vmatpush1.msra.mxu0 0.0
    %108 = vmatprep.subr.mxu0 0.0
    %109 = vmatpush1.msra.mxu0 0.0
    %110 = vmatprep.subr.mxu0 0.0
    %111 = vmatpush1.msra.mxu0 0.0
    %112 = vmatprep.subr.mxu0 0.0
    %113 = vmatpush1.msra.mxu0 0.0
    %114 = vmatprep.subr.mxu0 0.0
    %115 = vmatpush1.msra.mxu0 0.0
    %116 = vmatprep.subr.mxu0 0.0
    %117 = vmatpush1.msra.mxu0 0.0
    %118 = vmatprep.subr.mxu0 0.0
    %119 = vmatpush1.msra.mxu0 0.0
    %120 = vmatprep.subr.mxu0 0.0
    %121 = vmatpush1.msra.mxu0 0.0
    %122 = vmatprep.subr.mxu0 0.0
    %123 = vmatpush1.msra.mxu0 0.0
    %124 = vmatprep.subr.mxu0 0.0
    %125 = vmatpush1.msra.mxu0 0.0
    %126 = vmatprep.subr.mxu0 0.0
    %127 = vmatpush1.msra.mxu0 0.0
    %128 = vmatprep.subr.mxu0 0.0
    %129 = vmatpush1.msra.mxu0 0.0
    %130 = vmatprep.subr.mxu0 0.0
    %131 = vmatpush1.msra.mxu0 0.0
    %132 = vmatprep.subr.mxu0 0.0
    %133 = vmatpush1.msra.mxu0 0.0
    %134 = vmatprep.subr.mxu0 0.0
    %135 = vmatpush1.msra.mxu0 0.0
    %136 = vmatprep.subr.mxu0 0.0
    %137 = vmatpush1.msra.mxu0 0.0
    %138 = vmatprep.subr.mxu0 0.0
    %139 = vmatpush1.msra.mxu0 0.0
    %140 = vmatprep.subr.mxu0 0.0
    %141 = vmatpush1.msra.mxu0 0.0
    %142 = vmatprep.subr.mxu0 0.0
    %143 = vmatpush1.msra.mxu0 0.0
    %144 = vmatprep.subr.mxu0 0.0
    %145 = vmatpush1.msra.mxu0 0.0
    %146 = vmatprep.subr.mxu0 0.0
    %147 = vmatpush1.msra.mxu0 0.0
    %148 = vmatprep.subr.mxu0 0.0
    %149 = vmatpush1.msra.mxu0 0.0
    %150 = vmatprep.subr.mxu0 0.0
    %151 = vmatpush1.msra.mxu0 0.0
    %152 = vmatprep.subr.mxu0 0.0
    %153 = vmatpush1.msra.mxu0 0.0
    %154 = vmatprep.subr.mxu0 0.0
    %155 = vmatpush1.msra.mxu0 0.0
    %156 = vmatprep.subr.mxu0 0.0
    %157 = vmatpush1.msra.mxu0 0.0
    %158 = vmatprep.subr.mxu0 0.0
    %159 = vmatpush1.msra.mxu0 0.0
    %160 = vmatprep.mubr.f32.mxu0 0.0
    %161 = vmatmul.mubr.f32.gmra.mrb[0].mxu0 %v94
    %v162 = vpop.f32.mrb[0].mxu0
    %v163 = vadd.f32 %v90, %v162
    %v164 = vpop.f32.mrb[0].mxu0
    %165 = vdwg.mxu0
    %v166 = vmax.f32 %v163, 0.0
    %v167 = vld [vmem:[#allocation7] sm:$0xff]
    %v168 = vld [vmem:[#allocation7 + $0x8] sm:$0xff]
    %v169 = vld [vmem:[#allocation7 + $0x10] sm:$0xff]
    %v170 = vld [vmem:[#allocation7 + $0x18] sm:$0xff]
    %v171 = vld [vmem:[%s4] sm:$0x1]
    %v173 = vlaneseq
    %v174 = vshrl.u32 %v173, 7
    %v175 = vsub.s32 0, %v174
    %v176 = vrot.slane %v171, %v175
    %v179 = vsel %vm92, %v166, 0
    %181 = vmatprep.subr.mxu0 0.0
    %182 = vmatpush1.msra.mxu0 %v167
    %183 = vmatprep.subr.mxu0 0.0
    %184 = vmatpush1.msra.mxu0 %v168
    %185 = vmatprep.subr.mxu0 0.0
    %186 = vmatpush1.msra.mxu0 %v169
    %187 = vmatprep.subr.mxu0 0.0
    %188 = vmatpush1.msra.mxu0 %v170
    %189 = vmatprep.subr.mxu0 0.0
    %190 = vmatpush1.msra.mxu0 0.0
    %191 = vmatprep.subr.mxu0 0.0
    %192 = vmatpush1.msra.mxu0 0.0
    %193 = vmatprep.subr.mxu0 0.0
    %194 = vmatpush1.msra.mxu0 0.0
    %195 = vmatprep.subr.mxu0 0.0
    %196 = vmatpush1.msra.mxu0 0.0
    %197 = vmatprep.subr.mxu0 0.0
    %198 = vmatpush1.msra.mxu0 0.0
    %199 = vmatprep.subr.mxu0 0.0
    %200 = vmatpush1.msra.mxu0 0.0
    %201 = vmatprep.subr.mxu0 0.0
    %202 = vmatpush1.msra.mxu0 0.0
    %203 = vmatprep.subr.mxu0 0.0
    %204 = vmatpush1.msra.mxu0 0.0
    %205 = vmatprep.subr.mxu0 0.0
    %206 = vmatpush1.msra.mxu0 0.0
    %207 = vmatprep.subr.mxu0 0.0
    %208 = vmatpush1.msra.mxu0 0.0
    %209 = vmatprep.subr.mxu0 0.0
    %210 = vmatpush1.msra.mxu0 0.0
    %211 = vmatprep.subr.mxu0 0.0
    %212 = vmatpush1.msra.mxu0 0.0
    %213 = vmatprep.subr.mxu0 0.0
    %214 = vmatpush1.msra.mxu0 0.0
    %215 = vmatprep.subr.mxu0 0.0
    %216 = vmatpush1.msra.mxu0 0.0
    %217 = vmatprep.subr.mxu0 0.0
    %218 = vmatpush1.msra.mxu0 0.0
    %219 = vmatprep.subr.mxu0 0.0
    %220 = vmatpush1.msra.mxu0 0.0
    %221 = vmatprep.subr.mxu0 0.0
    %222 = vmatpush1.msra.mxu0 0.0
    %223 = vmatprep.subr.mxu0 0.0
    %224 = vmatpush1.msra.mxu0 0.0
    %225 = vmatprep.subr.mxu0 0.0
    %226 = vmatpush1.msra.mxu0 0.0
    %227 = vmatprep.subr.mxu0 0.0
    %228 = vmatpush1.msra.mxu0 0.0
    %229 = vmatprep.subr.mxu0 0.0
    %230 = vmatpush1.msra.mxu0 0.0
    %231 = vmatprep.subr.mxu0 0.0
    %232 = vmatpush1.msra.mxu0 0.0
    %233 = vmatprep.subr.mxu0 0.0
    %234 = vmatpush1.msra.mxu0 0.0
    %235 = vmatprep.subr.mxu0 0.0
    %236 = vmatpush1.msra.mxu0 0.0
    %237 = vmatprep.subr.mxu0 0.0
    %238 = vmatpush1.msra.mxu0 0.0
    %239 = vmatprep.subr.mxu0 0.0
    %240 = vmatpush1.msra.mxu0 0.0
    %241 = vmatprep.subr.mxu0 0.0
    %242 = vmatpush1.msra.mxu0 0.0
    %243 = vmatprep.subr.mxu0 0.0
    %244 = vmatpush1.msra.mxu0 0.0
    %245 = vmatprep.mubr.f32.mxu0 0.0
    %246 = vmatmul.mubr.f32.gmra.mrb[0].mxu0 %v179
    %v247 = vpop.f32.mrb[0].mxu0
    %v248 = vadd.f32 %v176, %v247
    %v249 = vpop.f32.mrb[0].mxu0
    %250 = vdwg.mxu0
    %v251 = vmax.f32 %v248, 0.0
    %v252 = vld [vmem:[#allocation8] sm:$0xff]
    %v253 = vld [vmem:[#allocation8 + $0x8] sm:$0xff]
    %v254 = vld [vmem:[#allocation8 + $0x10] sm:$0xff]
    %v255 = vld [vmem:[#allocation8 + $0x18] sm:$0xff]
    %v256 = vld [vmem:[%s6] sm:$0x1]
    %v258 = vlaneseq
    %v259 = vshrl.u32 %v258, 7
    %v260 = vsub.s32 0, %v259
    %v261 = vrot.slane %v256, %v260
    %v264 = vsel %vm92, %v251, 0
    %266 = vmatprep.subr.mxu0 0.0
    %267 = vmatpush1.msra.mxu0 %v252
    %268 = vmatprep.subr.mxu0 0.0
    %269 = vmatpush1.msra.mxu0 %v253
    %270 = vmatprep.subr.mxu0 0.0
    %271 = vmatpush1.msra.mxu0 %v254
    %272 = vmatprep.subr.mxu0 0.0
    %273 = vmatpush1.msra.mxu0 %v255
    %274 = vmatprep.subr.mxu0 0.0
    %275 = vmatpush1.msra.mxu0 0.0
    %276 = vmatprep.subr.mxu0 0.0
    %277 = vmatpush1.msra.mxu0 0.0
    %278 = vmatprep.subr.mxu0 0.0
    %279 = vmatpush1.msra.mxu0 0.0
    %280 = vmatprep.subr.mxu0 0.0
    %281 = vmatpush1.msra.mxu0 0.0
    %282 = vmatprep.subr.mxu0 0.0
    %283 = vmatpush1.msra.mxu0 0.0
    %284 = vmatprep.subr.mxu0 0.0
    %285 = vmatpush1.msra.mxu0 0.0
    %286 = vmatprep.subr.mxu0 0.0
    %287 = vmatpush1.msra.mxu0 0.0
    %288 = vmatprep.subr.mxu0 0.0
    %289 = vmatpush1.msra.mxu0 0.0
    %290 = vmatprep.subr.mxu0 0.0
    %291 = vmatpush1.msra.mxu0 0.0
    %292 = vmatprep.subr.mxu0 0.0
    %293 = vmatpush1.msra.mxu0 0.0
    %294 = vmatprep.subr.mxu0 0.0
    %295 = vmatpush1.msra.mxu0 0.0
    %296 = vmatprep.subr.mxu0 0.0
    %297 = vmatpush1.msra.mxu0 0.0
    %298 = vmatprep.subr.mxu0 0.0
    %299 = vmatpush1.msra.mxu0 0.0
    %300 = vmatprep.subr.mxu0 0.0
    %301 = vmatpush1.msra.mxu0 0.0
    %302 = vmatprep.subr.mxu0 0.0
    %303 = vmatpush1.msra.mxu0 0.0
    %304 = vmatprep.subr.mxu0 0.0
    %305 = vmatpush1.msra.mxu0 0.0
    %306 = vmatprep.subr.mxu0 0.0
    %307 = vmatpush1.msra.mxu0 0.0
    %308 = vmatprep.subr.mxu0 0.0
    %309 = vmatpush1.msra.mxu0 0.0
    %310 = vmatprep.subr.mxu0 0.0
    %311 = vmatpush1.msra.mxu0 0.0
    %312 = vmatprep.subr.mxu0 0.0
    %313 = vmatpush1.msra.mxu0 0.0
    %314 = vmatprep.subr.mxu0 0.0
    %315 = vmatpush1.msra.mxu0 0.0
    %316 = vmatprep.subr.mxu0 0.0
    %317 = vmatpush1.msra.mxu0 0.0
    %318 = vmatprep.subr.mxu0 0.0
    %319 = vmatpush1.msra.mxu0 0.0
    %320 = vmatprep.subr.mxu0 0.0
    %321 = vmatpush1.msra.mxu0 0.0
    %322 = vmatprep.subr.mxu0 0.0
    %323 = vmatpush1.msra.mxu0 0.0
    %324 = vmatprep.subr.mxu0 0.0
    %325 = vmatpush1.msra.mxu0 0.0
    %326 = vmatprep.subr.mxu0 0.0
    %327 = vmatpush1.msra.mxu0 0.0
    %328 = vmatprep.subr.mxu0 0.0
    %329 = vmatpush1.msra.mxu0 0.0
    %330 = vmatprep.mubr.f32.mxu0 0.0
    %331 = vmatmul.mubr.f32.gmra.mrb[0].mxu0 %v264
    %v332 = vpop.f32.mrb[0].mxu0
    %v333 = vadd.f32 %v261, %v332
    %v334 = vpop.f32.mrb[0].mxu0
    %335 = vdwg.mxu0
    %v336 = vmax.f32 %v333, 0.0
    %337 = vst [vmem:[#allocation10] sm:$0xff] %v336
    // Predicated region
    $region46: #{tpu_custom_call.1} parent=1 // pred_check
      _
    $region47: #{tpu_custom_call.1} parent=1 // pred_check_branch
      %339 = sbr.rel (0) target = $region49
    $region48: #{tpu_custom_call.1} parent=1 // pred_region
      %s341 = ssub.s32 128, 128
      %342 = vsyncadd [#allocation4], %s341
      %s344 = sshll.u32 [#allocation10], 4
      %s345 = int_to_ptr.vmem [resolvable:$true] %s344
      %347 = dma.vmem_to_hbm [thread:$0]  %s345, 128, %s7, [#allocation4]
    $region49: #{tpu_custom_call.1} parent=1 // pred_fallthru
      _
    // Predicated region
    $region50: #{tpu_custom_call.1} parent=1 // pred_check
      _
    $region51: #{tpu_custom_call.1} parent=1 // pred_check_branch
      %349 = sbr.rel (0) target = $region53
    $region52: #{tpu_custom_call.1} parent=1 // pred_region
      %350 = dma.done [#allocation4], 128
    $region53: #{tpu_custom_call.1} parent=1 // pred_fallthru
      _
    %351 = vsyncpa [#allocation3], 1
    %352 = vsyncpa [#allocation6], 1
    %353 = vsyncpa [#allocation9], 1
    %354 = vsyncpa [#allocation4], 1

</llo_original>
